<compile_context>
chip_gen: v7x
topology: tpu7x:2x2x1
jax: 0.10.0
libtpu: 0.0.40
codegen_flags: <defaults>
</compile_context>

<pallas_src>
import functools

import jax
import jax.numpy as jnp
from jax.experimental import pallas as pl
from jax.experimental.pallas import tpu as pltpu

EPS = 1e-5  # torch.nn.InstanceNorm2d default


# ----------------------------------------------------------------------------
# Kernels
# ----------------------------------------------------------------------------
def _skip_full_kernel(x_ref, w_ref, p_ref, a_ref, y_ref, o_ref):
    # x_ref: (1, Cin, HW)   y_ref/o_ref: (1, Cout, HW)
    # w_ref: (Cout, Cin) f32   p_ref: (Cout, 3) = [bias | gamma | beta] f32
    # a_ref: (2,) f32 in SMEM = [alpha1, alpha2]
    x = x_ref[0].astype(jnp.float32)                               # (Cin, HW)
    z = jnp.dot(w_ref[...], x, preferred_element_type=jnp.float32) # (Cout, HW)
    z = z + p_ref[:, 0:1]                                          # conv bias

    # InstanceNorm2d: per-(n, c) stats over the spatial axis (biased var).
    mean = jnp.mean(z, axis=1, keepdims=True)                      # (Cout, 1)
    centered = z - mean
    var = jnp.mean(centered * centered, axis=1, keepdims=True)
    norm = centered * jax.lax.rsqrt(var + EPS)
    act = jnp.maximum(norm * p_ref[:, 1:2] + p_ref[:, 2:3], 0.0)   # affine+ReLU

    out = a_ref[0] * act + a_ref[1] * y_ref[0].astype(jnp.float32)
    o_ref[0] = out.astype(o_ref.dtype)


def _skip_stats_kernel(x_ref, w_ref, p_ref, s_ref, *, hw, hw_blk):
    # Pass 1 of the tiled path: accumulate per-channel sum / sum-of-squares of
    # z = conv1x1(x) + bias over HW tiles.  s_ref: (1, Cout, 2) f32, resident
    # across the HW ("arbitrary") grid axis.
    t = pl.program_id(1)

    @pl.when(t == 0)
    def _():
        s_ref[...] = jnp.zeros_like(s_ref)

    x = x_ref[0].astype(jnp.float32)                               # (Cin, blk)
    z = jnp.dot(w_ref[...], x, preferred_element_type=jnp.float32)
    z = z + p_ref[:, 0:1]

    if hw % hw_blk:
        # Edge tile: mask out-of-range columns (jnp.where, NaN/Inf safe).
        col = jax.lax.broadcasted_iota(jnp.int32, z.shape, 1) + t * hw_blk
        valid = col < hw
        sum_z = jnp.sum(jnp.where(valid, z, 0.0), axis=1, keepdims=True)
        sum_z2 = jnp.sum(jnp.where(valid, z * z, 0.0), axis=1, keepdims=True)
    else:
        sum_z = jnp.sum(z, axis=1, keepdims=True)
        sum_z2 = jnp.sum(z * z, axis=1, keepdims=True)

    s_ref[0] += jnp.concatenate([sum_z, sum_z2], axis=1)           # (Cout, 2)


def _skip_apply_kernel(x_ref, w_ref, p_ref, mr_ref, a_ref, y_ref, o_ref):
    # Pass 2 of the tiled path: recompute conv tile, apply norm/affine/ReLU and
    # the alpha blend.  mr_ref: (1, Cout, 2) = [mean | rstd] per (n, c).
    x = x_ref[0].astype(jnp.float32)                               # (Cin, blk)
    z = jnp.dot(w_ref[...], x, preferred_element_type=jnp.float32)
    z = z + p_ref[:, 0:1]
    norm = (z - mr_ref[0, :, 0:1]) * mr_ref[0, :, 1:2]
    act = jnp.maximum(norm * p_ref[:, 1:2] + p_ref[:, 2:3], 0.0)
    out = a_ref[0] * act + a_ref[1] * y_ref[0].astype(jnp.float32)
    o_ref[0] = out.astype(o_ref.dtype)


# ----------------------------------------------------------------------------
# Wrapper
# ----------------------------------------------------------------------------
def _vmem_capacity_bytes():
    try:
        info = pltpu.get_tpu_info()
        cap = getattr(info, "vmem_capacity_bytes", None)
        if cap:
            return int(cap)
    except Exception:
        pass
    return 64 * 2 ** 20  # conservative (v7x per-TC VMEM)


def skip_forward(x_nchw, y_nchw, weight, bias, gamma, beta, alpha1, alpha2,
                 *, hw_block=None):
    """x: (N, Cin, H, W), y: (N, Cout, H, W). Returns (N, Cout, H, W)."""
    N, Cin, H, W = x_nchw.shape
    Cout = weight.shape[0]
    HW = H * W
    out_dtype = jnp.promote_types(x_nchw.dtype, y_nchw.dtype)
    out_itemsize = jnp.dtype(out_dtype).itemsize

    # Glue is a pure reshape (no data movement, no pad, no transpose).
    x = x_nchw.reshape(N, Cin, HW)
    y = y_nchw.reshape(N, Cout, HW)                      # native dtype; cast in kernel
    w = weight.reshape(Cout, Cin).astype(jnp.float32)
    params = jnp.stack(                                  # (Cout, 3) = [b|g|beta]
        [bias.reshape(Cout), gamma.reshape(Cout), beta.reshape(Cout)],
        axis=1).astype(jnp.float32)
    alphas = jnp.stack(                                  # (2,), lives in SMEM
        [jnp.asarray(alpha1, jnp.float32).reshape(()),
         jnp.asarray(alpha2, jnp.float32).reshape(())])

    # --- VMEM accounting: real itemsizes + f32 compute temporaries ----------
    vmem_budget = _vmem_capacity_bytes() - 8 * 2 ** 20   # physical cap - headroom

    def step_bytes(blk):
        io = 2 * blk * (Cin * x.dtype.itemsize            # x, double-buffered
                        + Cout * y.dtype.itemsize          # y
                        + Cout * out_itemsize)             # out
        tmp = 4 * blk * (Cin + 3 * Cout)                    # x_f32, z, norm, act
        return io + tmp + 64 * 1024                         # weights/params/slack

    flops = 2 * N * Cout * Cin * HW
    total_bytes = int(x.nbytes + y.nbytes + N * Cout * HW * out_itemsize)
    cost = pl.CostEstimate(flops=flops, transcendentals=N * Cout,
                           bytes_accessed=total_bytes)

    use_full = hw_block is None and step_bytes(HW) <= vmem_budget

    # ------------------------------------------------------------------ fast
    if use_full:
        vmem_limit = int(min(vmem_budget,
                             max(32 * 2 ** 20, int(1.25 * step_bytes(HW)))))
        out = pl.pallas_call(
            _skip_full_kernel,
            out_shape=jax.ShapeDtypeStruct((N, Cout, HW), out_dtype),
            grid_spec=pltpu.PrefetchScalarGridSpec(
                num_scalar_prefetch=0,
                grid=(N,),
                in_specs=[
                    pl.BlockSpec((1, Cin, HW), lambda n: (n, 0, 0)),    # x
                    pl.BlockSpec((Cout, Cin), lambda n: (0, 0)),        # weight
                    pl.BlockSpec((Cout, 3), lambda n: (0, 0)),          # b|g|beta
                    pl.BlockSpec(memory_space=pltpu.MemorySpace.SMEM),  # alphas
                    pl.BlockSpec((1, Cout, HW), lambda n: (n, 0, 0)),   # y
                ],
                out_specs=pl.BlockSpec((1, Cout, HW), lambda n: (n, 0, 0)),
            ),
            compiler_params=pltpu.CompilerParams(
                dimension_semantics=("parallel",),
                vmem_limit_bytes=vmem_limit),
            cost_estimate=cost,
        )(x, w, params, alphas, y)
        return out.reshape(N, Cout, H, W)

    # --------------------------------------------------- HW-tiled, two-pass
    if hw_block is None:
        hw_blk = min(8192, ((HW + 127) // 128) * 128)
        while hw_blk > 128 and step_bytes(hw_blk) > vmem_budget:
            hw_blk -= 128
    else:
        hw_blk = max(128, ((int(hw_block) + 127) // 128) * 128)
    n_t = pl.cdiv(HW, hw_blk)
    vmem_limit = int(min(vmem_budget,
                         max(32 * 2 ** 20, int(1.25 * step_bytes(hw_blk)))))

    # Pass 1: per-(n, c) sum / sum-of-squares over HW tiles.
    stats_kernel = functools.partial(_skip_stats_kernel, hw=HW, hw_blk=hw_blk)
    sums = pl.pallas_call(
        stats_kernel,
        out_shape=jax.ShapeDtypeStruct((N, Cout, 2), jnp.float32),
        grid_spec=pltpu.PrefetchScalarGridSpec(
            num_scalar_prefetch=0,
            grid=(N, n_t),
            in_specs=[
                pl.BlockSpec((1, Cin, hw_blk), lambda n, t: (n, 0, t)),  # x
                pl.BlockSpec((Cout, Cin), lambda n, t: (0, 0)),          # weight
                pl.BlockSpec((Cout, 3), lambda n, t: (0, 0)),            # params
            ],
            out_specs=pl.BlockSpec((1, Cout, 2), lambda n, t: (n, 0, 0)),
        ),
        compiler_params=pltpu.CompilerParams(
            dimension_semantics=("parallel", "arbitrary"),
            vmem_limit_bytes=vmem_limit),
        cost_estimate=pl.CostEstimate(flops=flops, transcendentals=0,
                                      bytes_accessed=int(x.nbytes)),
    )(x, w, params)

    # Tiny per-(n, c) finalize of mean / rstd in plain JAX.
    mean = sums[:, :, 0] / HW                                    # (N, Cout)
    var = jnp.maximum(sums[:, :, 1] / HW - mean * mean, 0.0)
    mr = jnp.stack([mean, jax.lax.rsqrt(var + EPS)], axis=-1)    # (N, Cout, 2)

    # Pass 2: recompute conv per tile, apply norm/affine/ReLU + alpha blend.
    out = pl.pallas_call(
        _skip_apply_kernel,
        out_shape=jax.ShapeDtypeStruct((N, Cout, HW), out_dtype),
        grid_spec=pltpu.PrefetchScalarGridSpec(
            num_scalar_prefetch=0,
            grid=(N, n_t),
            in_specs=[
                pl.BlockSpec((1, Cin, hw_blk), lambda n, t: (n, 0, t)),   # x
                pl.BlockSpec((Cout, Cin), lambda n, t: (0, 0)),           # weight
                pl.BlockSpec((Cout, 3), lambda n, t: (0, 0)),             # params
                pl.BlockSpec((1, Cout, 2), lambda n, t: (n, 0, 0)),       # mean|rstd
                pl.BlockSpec(memory_space=pltpu.MemorySpace.SMEM),        # alphas
                pl.BlockSpec((1, Cout, hw_blk), lambda n, t: (n, 0, t)),  # y
            ],
            out_specs=pl.BlockSpec((1, Cout, hw_blk), lambda n, t: (n, 0, t)),
        ),
        compiler_params=pltpu.CompilerParams(
            dimension_semantics=("parallel", "parallel"),
            vmem_limit_bytes=vmem_limit),
        cost_estimate=cost,
    )(x, w, params, mr, alphas, y)
    return out.reshape(N, Cout, H, W)


# ----------------------------------------------------------------------------
# Reference + self-test
# ----------------------------------------------------------------------------
def _reference(x_nchw, y_nchw, weight, bias, gamma, beta, alpha1, alpha2):
    N, Cin, H, W = x_nchw.shape
    Cout = weight.shape[0]
    w = weight.reshape(Cout, Cin)
    z = jnp.einsum('nchw,oc->nohw', x_nchw, w) + bias.reshape(1, Cout, 1, 1)
    mean = jnp.mean(z, axis=(2, 3), keepdims=True)
    var = jnp.mean((z - mean) ** 2, axis=(2, 3), keepdims=True)
    norm = (z - mean) / jnp.sqrt(var + EPS)
    act = jnp.maximum(norm * gamma.reshape(1, Cout, 1, 1)
                      + beta.reshape(1, Cout, 1, 1), 0.0)
    return alpha1 * act + alpha2 * y_nchw


if __name__ == "__main__":
    key = jax.random.PRNGKey(0)

    def make_case(k, N, Cin, Cout, H, W):
        kx, ky, kw, kb, kg, kbeta = jax.random.split(k, 6)
        x = jax.random.normal(kx, (N, Cin, H, W), jnp.float32)
        y = jax.random.normal(ky, (N, Cout, H, W), jnp.float32)
        weight = jax.random.normal(kw, (Cout, Cin, 1, 1), jnp.float32) * 0.1
        bias = jax.random.normal(kb, (Cout,), jnp.float32) * 0.1
        gamma = 1.0 + 0.05 * jax.random.normal(kg, (Cout,), jnp.float32)
        beta = 0.05 * jax.random.normal(kbeta, (Cout,), jnp.float32)
        alpha1 = jnp.float32(1.0)   # self.alpha1.data.fill_(1.0)
        alpha2 = jnp.float32(0.5)   # self.alpha2.data.fill_(0.5)
        return (x, y, weight, bias, gamma, beta, alpha1, alpha2)

    k1, k2, k3 = jax.random.split(key, 3)

    # Case 1: HW multiple of 128 (lane-dense full-HW path).
    args = make_case(k1, N=2, Cin=4, Cout=8, H=16, W=16)
    out = jax.block_until_ready(skip_forward(*args))
    ref = _reference(*args)
    assert out.shape == (2, 8, 16, 16)
    assert jnp.allclose(out, ref, atol=2e-4, rtol=2e-4), "mismatch (case 1)"

    # Case 2: ragged HW=100 -- full-HW path with no wrapper pad / slice.
    args2 = make_case(k2, N=1, Cin=3, Cout=6, H=10, W=10)
    out2 = jax.block_until_ready(skip_forward(*args2))
    ref2 = _reference(*args2)
    assert out2.shape == (1, 6, 10, 10)
    assert jnp.allclose(out2, ref2, atol=2e-4, rtol=2e-4), "mismatch (case 2)"

    # Case 3: force the HW-tiled two-pass path (HW=320 with 128-wide tiles,
    # exercising the masked edge tile + accumulator pattern).
    args3 = make_case(k3, N=2, Cin=4, Cout=8, H=16, W=20)
    out3 = jax.block_until_ready(skip_forward(*args3, hw_block=128))
    ref3 = _reference(*args3)
    assert out3.shape == (2, 8, 16, 20)
    assert jnp.allclose(out3, ref3, atol=2e-4, rtol=2e-4), "mismatch (case 3)"

    print("KERNEL_OK")
</pallas_src>

<mosaic_0001>
module attributes {stable_mosaic.version = 11 : i64} {
  func.func @_skip_full_kernel(%arg0: i32, %arg1: memref<1x4x256xf32, #tpu.memory_space<vmem>>, %arg2: memref<8x4xf32, #tpu.memory_space<vmem>>, %arg3: memref<8x3xf32, #tpu.memory_space<vmem>>, %arg4: memref<2xf32, #tpu.memory_space<smem>>, %arg5: memref<1x8x256xf32, #tpu.memory_space<vmem>>, %arg6: memref<1x8x256xf32, #tpu.memory_space<vmem>>) attributes {dimension_semantics = [#tpu.dimension_semantics<parallel>], iteration_bounds = array<i64: 2>, scalar_prefetch = 0 : i64, scratch_operands = 0 : i64, tpu.core_type = #tpu.core_type<tc>, window_params = [{transform_indices = @transform_0, window_bounds = array<i64: 1, 4, 256>}, {pipeline_mode = #tpu.pipeline_mode<synchronous>, transform_indices = @transform_1, window_bounds = array<i64: 8, 4>}, {pipeline_mode = #tpu.pipeline_mode<synchronous>, transform_indices = @transform_2, window_bounds = array<i64: 8, 3>}, {transform_indices = @transform_3, window_bounds = array<i64: 2>}, {transform_indices = @transform_4, window_bounds = array<i64: 1, 8, 256>}, {transform_indices = @transform_5, window_bounds = array<i64: 1, 8, 256>}]} {
    %c0 = arith.constant 0 : index
    %c0_0 = arith.constant 0 : index
    %c0_1 = arith.constant 0 : index
    %0 = vector.load %arg1[%c0, %c0_0, %c0_1] : memref<1x4x256xf32, #tpu.memory_space<vmem>>, vector<1x4x256xf32>
    %1 = vector.shape_cast %0 : vector<1x4x256xf32> to vector<4x256xf32>
    %c0_2 = arith.constant 0 : index
    %c0_3 = arith.constant 0 : index
    %2 = vector.load %arg2[%c0_2, %c0_3] : memref<8x4xf32, #tpu.memory_space<vmem>>, vector<8x4xf32>
    %cst = arith.constant dense<0.000000e+00> : vector<8x256xf32>
    %3 = tpu.matmul %2, %1, %cst {dimension_numbers = #tpu.dot_dimension_numbers<[1], [0], [0], [1], [0, 0, 1, 1], [], []>} : vector<8x4xf32>, vector<4x256xf32>, vector<8x256xf32> -> vector<8x256xf32>
    %c0_4 = arith.constant 0 : index
    %c0_5 = arith.constant 0 : index
    %4 = vector.load %arg3[%c0_4, %c0_5] : memref<8x3xf32, #tpu.memory_space<vmem>>, vector<8x1xf32>
    %5 = vector.broadcast %4 : vector<8x1xf32> to vector<8x256xf32>
    %6 = arith.addf %3, %5 : vector<8x256xf32>
    %cst_6 = arith.constant dense<0.000000e+00> : vector<8xf32>
    %7 = vector.multi_reduction <add>, %6, %cst_6 [1] : vector<8x256xf32> to vector<8xf32>
    %8 = vector.shape_cast %7 : vector<8xf32> to vector<8x1xf32>
    %cst_7 = arith.constant 2.560000e+02 : f32
    %9 = vector.broadcast %cst_7 : f32 to vector<8x1xf32>
    %10 = arith.divf %8, %9 : vector<8x1xf32>
    %11 = vector.broadcast %10 : vector<8x1xf32> to vector<8x256xf32>
    %12 = arith.subf %6, %11 : vector<8x256xf32>
    %13 = arith.mulf %12, %12 : vector<8x256xf32>
    %cst_8 = arith.constant dense<0.000000e+00> : vector<8xf32>
    %14 = vector.multi_reduction <add>, %13, %cst_8 [1] : vector<8x256xf32> to vector<8xf32>
    %15 = vector.shape_cast %14 : vector<8xf32> to vector<8x1xf32>
    %cst_9 = arith.constant 2.560000e+02 : f32
    %16 = vector.broadcast %cst_9 : f32 to vector<8x1xf32>
    %17 = arith.divf %15, %16 : vector<8x1xf32>
    %cst_10 = arith.constant 9.99999974E-6 : f32
    %18 = vector.broadcast %cst_10 : f32 to vector<8x1xf32>
    %19 = arith.addf %17, %18 : vector<8x1xf32>
    %20 = math.rsqrt %19 : vector<8x1xf32>
    %21 = vector.broadcast %20 : vector<8x1xf32> to vector<8x256xf32>
    %22 = arith.mulf %12, %21 : vector<8x256xf32>
    %c0_11 = arith.constant 0 : index
    %c1 = arith.constant 1 : index
    %23 = vector.load %arg3[%c0_11, %c1] : memref<8x3xf32, #tpu.memory_space<vmem>>, vector<8x1xf32>
    %24 = vector.broadcast %23 : vector<8x1xf32> to vector<8x256xf32>
    %25 = arith.mulf %22, %24 : vector<8x256xf32>
    %c0_12 = arith.constant 0 : index
    %c2 = arith.constant 2 : index
    %26 = vector.load %arg3[%c0_12, %c2] : memref<8x3xf32, #tpu.memory_space<vmem>>, vector<8x1xf32>
    %27 = vector.broadcast %26 : vector<8x1xf32> to vector<8x256xf32>
    %28 = arith.addf %25, %27 : vector<8x256xf32>
    %cst_13 = arith.constant 0.000000e+00 : f32
    %29 = vector.broadcast %cst_13 : f32 to vector<8x256xf32>
    %30 = arith.maximumf %28, %29 : vector<8x256xf32>
    %c0_14 = arith.constant 0 : index
    %31 = memref.load %arg4[%c0_14] : memref<2xf32, #tpu.memory_space<smem>>
    %32 = vector.broadcast %31 : f32 to vector<8x256xf32>
    %33 = arith.mulf %32, %30 : vector<8x256xf32>
    %c1_15 = arith.constant 1 : index
    %34 = memref.load %arg4[%c1_15] : memref<2xf32, #tpu.memory_space<smem>>
    %c0_16 = arith.constant 0 : index
    %c0_17 = arith.constant 0 : index
    %c0_18 = arith.constant 0 : index
    %35 = vector.load %arg5[%c0_16, %c0_17, %c0_18] : memref<1x8x256xf32, #tpu.memory_space<vmem>>, vector<1x8x256xf32>
    %36 = vector.shape_cast %35 : vector<1x8x256xf32> to vector<8x256xf32>
    %37 = vector.broadcast %34 : f32 to vector<8x256xf32>
    %38 = arith.mulf %37, %36 : vector<8x256xf32>
    %39 = arith.addf %33, %38 : vector<8x256xf32>
    %c0_19 = arith.constant 0 : index
    %c0_20 = arith.constant 0 : index
    %c0_21 = arith.constant 0 : index
    %40 = vector.load %arg6[%c0_19, %c0_20, %c0_21] : memref<1x8x256xf32, #tpu.memory_space<vmem>>, vector<1x8x256xf32>
    %41 = vector.shape_cast %40 : vector<1x8x256xf32> to vector<8x256xf32>
    %42 = vector.shape_cast %39 : vector<8x256xf32> to vector<1x8x256xf32>
    tpu.vector_store %arg6[%c0_19, %c0_20, %c0_21], %42 {strides = array<i32>} : memref<1x8x256xf32, #tpu.memory_space<vmem>>, vector<1x8x256xf32>,
    return
  }
  func.func @transform_0(%arg0: i32) -> (i32, i32, i32) {
    %c0_i32 = arith.constant 0 : i32
    %c0_i32_0 = arith.constant 0 : i32
    %c0_i32_1 = arith.constant 0 : i32
    return %arg0, %c0_i32, %c0_i32_0 : i32, i32, i32
  }
  func.func @transform_1(%arg0: i32) -> (i32, i32) {
    %c0_i32 = arith.constant 0 : i32
    %c0_i32_0 = arith.constant 0 : i32
    %c0_i32_1 = arith.constant 0 : i32
    return %c0_i32, %c0_i32_0 : i32, i32
  }
  func.func @transform_2(%arg0: i32) -> (i32, i32) {
    %c0_i32 = arith.constant 0 : i32
    %c0_i32_0 = arith.constant 0 : i32
    %c0_i32_1 = arith.constant 0 : i32
    return %c0_i32, %c0_i32_0 : i32, i32
  }
  func.func @transform_3(%arg0: i32) -> i32 {
    %c0_i32 = arith.constant 0 : i32
    %c0_i32_0 = arith.constant 0 : i32
    return %c0_i32 : i32
  }
  func.func @transform_4(%arg0: i32) -> (i32, i32, i32) {
    %c0_i32 = arith.constant 0 : i32
    %c0_i32_0 = arith.constant 0 : i32
    %c0_i32_1 = arith.constant 0 : i32
    return %arg0, %c0_i32, %c0_i32_0 : i32, i32, i32
  }
  func.func @transform_5(%arg0: i32) -> (i32, i32, i32) {
    %c0_i32 = arith.constant 0 : i32
    %c0_i32_0 = arith.constant 0 : i32
    %c0_i32_1 = arith.constant 0 : i32
    return %arg0, %c0_i32, %c0_i32_0 : i32, i32, i32
  }
}

</mosaic_0001>

<llo_original>
// kernel: tpu_custom_call.1
$region0: #{tpu_custom_call.1}
  #allocation0 [shape = 'u32[]', space=smem, size = 0x4, offset = 0x4, fixed_abs, tag = 'smem constant byte address 0x4 - core index']
  #allocation1 [shape = 'u32[144,128]{1,0:T(1,128)}', space=vmem, size = 0x12000, scoped, tag = 'internal scratch']
  %s0 = inlined_call_operand.hbm [shape: f32[2,4,256], index: 0, kind: input, shape index: {}]
  %s1 = inlined_call_operand.vmem [shape: f32[8,4], index: 1, kind: input, shape index: {}]
  %s2 = inlined_call_operand.vmem [shape: f32[8,3], index: 2, kind: input, shape index: {}]
  %s3 = inlined_call_operand.vmem [shape: f32[2], index: 3, kind: input, shape index: {}]
  %s4 = inlined_call_operand.vmem [shape: f32[2,8,256], index: 4, kind: input, shape index: {}]
  %s5 = inlined_call_operand.hbm [shape: f32[2,8,256], index: 5, kind: output, shape index: {}]
  %s6 = sld [smem:[#allocation0]]
  $region61: #{tpu_custom_call.1} parent=0
    _
  %s8 = ssub.s32 1, %s6
  %s9 = scalar_select 0, %s8, %s6
  $region1: #{tpu_custom_call.1} parent=0
    #allocation2 [shape = 'u8[8192]{0}', space=vmem, size = 0x2000, scoped, tag = 'input window, operand 0']
    #allocation3 [shape = 's32[2]{0}', space=sflag, size = 0x8, scoped, tag = 'scoped memory for tpu_custom_call.1']
    #allocation4 [shape = 's32[2]{0}', space=sflag, size = 0x8, scoped, tag = 'scoped memory for tpu_custom_call.1']
    #allocation5 [shape = 's32[2]{0}', space=sflag, size = 0x8, scoped, tag = 'scoped memory for tpu_custom_call.1']
    #allocation6 [shape = 'u8[512]{0}', space=smem, size = 0x200, scoped, tag = 'input window, operand 3, single buffered']
    #allocation7 [shape = 'u8[16384]{0}', space=vmem, size = 0x4000, scoped, tag = 'output window, operand 0']
    %10 = vsyncpa [#allocation3], 0
    %s11 = scalar_lea.sflag [#allocation3], 1
    %12 = vsyncpa %s11, 0
    %13 = vsyncpa [#allocation5], 0
    %14 = vsyncpa [#allocation4], 0
    %s15 = scalar_lea.sflag [#allocation4], 1
    %16 = vsyncpa %s15, 0
    loop: start=0, step=1, limit=4
    $region2: #{tpu_custom_call.1} parent=1 // loop_pre_header
      _
    $region3: #{tpu_custom_call.1} parent=1 // loop_header
      %s18 = sphi 0, %s22
      %p19 = scmp.ge.s32.totalorder %s18, 4
      %s28 = sphi 0, %s30
      %s31 = sphi 0, %s28
      %s32 = sphi 0, %s31
      %s48 = sphi 0, %s32
      %s52 = sphi 0, %s52
      %s54 = sphi 0, %s52
      %s55 = sphi 0, %s54
      %s69 = sphi 0, %s55
      %s73 = sphi 0, %s73
      %s75 = sphi 0, %s73
      %s76 = sphi 0, %s75
      %s90 = sphi 0, %s76
      %s94 = sphi 0, %s94
      %s96 = sphi 0, %s94
      %s97 = sphi 0, %s96
      %s111 = sphi 0, %s97
      %s117 = sphi 0, %s119
      %s120 = sphi 0, %s117
      %s121 = sphi 0, %s120
      %s137 = sphi 0, %s121
      %s143 = sphi 0, %s145
      %s146 = sphi 0, %s143
      %s147 = sphi 0, %s146
      %s163 = sphi 0, %s147
    $region4: #{tpu_custom_call.1} parent=1 // loop_header_branch
      %21 = sbr.rel (%p19) target = $region8
    $region5: #{tpu_custom_call.1} parent=1 // loop_body
      %s23 = ssub.s32 %s18, 1
      %s24 = ssub.s32 %s18, 2
      %s25 = sadd.s32 %s18, 1
      %s26 = ssub.s32 %s18, %s25
      %p27 = scmp.eq.s32.totalorder %s26, 0
      %s29 = sadd.s32 %s28, 1
      %s30 = scalar_select %p27, %s28, %s29
      %p33 = pneg %p27
      %p34 = scmp.eq.s32.totalorder %s18, 1
      %p35 = por %p33, %p34
      %p36 = scmp.ne.s32.totalorder %s28, %s31
      %p37 = scmp.eq.s32.totalorder %s18, 0
      %p38 = por %p36, %p37
      %p39 = scmp.ne.s32.totalorder %s28, %s31
      %p40 = scmp.eq.s32.totalorder %s23, 1
      %p41 = por %p39, %p40
      %p42 = scmp.ne.s32.totalorder %s31, %s32
      %p43 = scmp.eq.s32.totalorder %s23, 0
      %p44 = por %p42, %p43
      %p45 = scmp.ne.s32.totalorder %s31, %s32
      %p46 = scmp.eq.s32.totalorder %s24, 1
      %p47 = por %p45, %p46
      %p49 = scmp.ne.s32.totalorder %s32, %s48
      %p50 = scmp.eq.s32.totalorder %s24, 0
      %p51 = por %p49, %p50
      %s53 = sadd.s32 %s52, 1
      %p56 = scmp.eq.s32.totalorder %s18, 1
      %p57 = scmp.ne.s32.totalorder %s52, %s54
      %p58 = scmp.eq.s32.totalorder %s18, 0
      %p59 = por %p57, %p58
      %p60 = scmp.ne.s32.totalorder %s52, %s54
      %p61 = scmp.eq.s32.totalorder %s23, 1
      %p62 = por %p60, %p61
      %p63 = scmp.ne.s32.totalorder %s54, %s55
      %p64 = scmp.eq.s32.totalorder %s23, 0
      %p65 = por %p63, %p64
      %p66 = scmp.ne.s32.totalorder %s54, %s55
      %p67 = scmp.eq.s32.totalorder %s24, 1
      %p68 = por %p66, %p67
      %p70 = scmp.ne.s32.totalorder %s55, %s69
      %p71 = scmp.eq.s32.totalorder %s24, 0
      %p72 = por %p70, %p71
      %s74 = sadd.s32 %s73, 1
      %p77 = scmp.eq.s32.totalorder %s18, 1
      %p78 = scmp.ne.s32.totalorder %s73, %s75
      %p79 = scmp.eq.s32.totalorder %s18, 0
      %p80 = por %p78, %p79
      %p81 = scmp.ne.s32.totalorder %s73, %s75
      %p82 = scmp.eq.s32.totalorder %s23, 1
      %p83 = por %p81, %p82
      %p84 = scmp.ne.s32.totalorder %s75, %s76
      %p85 = scmp.eq.s32.totalorder %s23, 0
      %p86 = por %p84, %p85
      %p87 = scmp.ne.s32.totalorder %s75, %s76
      %p88 = scmp.eq.s32.totalorder %s24, 1
      %p89 = por %p87, %p88
      %p91 = scmp.ne.s32.totalorder %s76, %s90
      %p92 = scmp.eq.s32.totalorder %s24, 0
      %p93 = por %p91, %p92
      %s95 = sadd.s32 %s94, 1
      %p98 = scmp.eq.s32.totalorder %s18, 1
      %p99 = scmp.ne.s32.totalorder %s94, %s96
      %p100 = scmp.eq.s32.totalorder %s18, 0
      %p101 = por %p99, %p100
      %p102 = scmp.ne.s32.totalorder %s94, %s96
      %p103 = scmp.eq.s32.totalorder %s23, 1
      %p104 = por %p102, %p103
      %p105 = scmp.ne.s32.totalorder %s96, %s97
      %p106 = scmp.eq.s32.totalorder %s23, 0
      %p107 = por %p105, %p106
      %p108 = scmp.ne.s32.totalorder %s96, %s97
      %p109 = scmp.eq.s32.totalorder %s24, 1
      %p110 = por %p108, %p109
      %p112 = scmp.ne.s32.totalorder %s97, %s111
      %p113 = scmp.eq.s32.totalorder %s24, 0
      %p114 = por %p112, %p113
      %s115 = ssub.s32 %s18, %s25
      %p116 = scmp.eq.s32.totalorder %s115, 0
      %s118 = sadd.s32 %s117, 1
      %s119 = scalar_select %p116, %s117, %s118
      %p122 = pneg %p116
      %p123 = scmp.eq.s32.totalorder %s18, 1
      %p124 = por %p122, %p123
      %p125 = scmp.ne.s32.totalorder %s117, %s120
      %p126 = scmp.eq.s32.totalorder %s18, 0
      %p127 = por %p125, %p126
      %p128 = scmp.ne.s32.totalorder %s117, %s120
      %p129 = scmp.eq.s32.totalorder %s23, 1
      %p130 = por %p128, %p129
      %p131 = scmp.ne.s32.totalorder %s120, %s121
      %p132 = scmp.eq.s32.totalorder %s23, 0
      %p133 = por %p131, %p132
      %p134 = scmp.ne.s32.totalorder %s120, %s121
      %p135 = scmp.eq.s32.totalorder %s24, 1
      %p136 = por %p134, %p135
      %p138 = scmp.ne.s32.totalorder %s121, %s137
      %p139 = scmp.eq.s32.totalorder %s24, 0
      %p140 = por %p138, %p139
      %s141 = ssub.s32 %s18, %s25
      %p142 = scmp.eq.s32.totalorder %s141, 0
      %s144 = sadd.s32 %s143, 1
      %s145 = scalar_select %p142, %s143, %s144
      %p148 = pneg %p142
      %p149 = scmp.eq.s32.totalorder %s18, 1
      %p150 = por %p148, %p149
      %p151 = scmp.ne.s32.totalorder %s143, %s146
      %p152 = scmp.eq.s32.totalorder %s18, 0
      %p153 = por %p151, %p152
      %p154 = scmp.ne.s32.totalorder %s143, %s146
      %p155 = scmp.eq.s32.totalorder %s23, 1
      %p156 = por %p154, %p155
      %p157 = scmp.ne.s32.totalorder %s146, %s147
      %p158 = scmp.eq.s32.totalorder %s23, 0
      %p159 = por %p157, %p158
      %p160 = scmp.ne.s32.totalorder %s146, %s147
      %p161 = scmp.eq.s32.totalorder %s24, 1
      %p162 = por %p160, %p161
      %p164 = scmp.ne.s32.totalorder %s147, %s163
      %p165 = scmp.eq.s32.totalorder %s24, 0
      %p166 = por %p164, %p165
      %p167 = scmp.le.s32.totalorder 1, %s18
      %p168 = scmp.lt.s32.totalorder %s18, 3
      %p169 = pnand %p167, %p168
      %p170 = pneg %p169
      // Predicated region
      $region9: #{tpu_custom_call.1} parent=5 // pred_check
        _
      $region10: #{tpu_custom_call.1} parent=5 // pred_check_branch
        %172 = sbr.rel (%p169) target = $region12
      $region11: #{tpu_custom_call.1} parent=5 // pred_region
        %s173 = ssub.s32 %s18, 1
        // Predicated region
        $region13: #{tpu_custom_call.1} parent=11 // pred_check
          %p174 = pneg %p65
        $region14: #{tpu_custom_call.1} parent=11 // pred_check_branch
          %176 = sbr.rel (%p174) target = $region16
        $region15: #{tpu_custom_call.1} parent=11 // pred_region
          _
        $region16: #{tpu_custom_call.1} parent=11 // pred_fallthru
          _
        // Predicated region
        $region17: #{tpu_custom_call.1} parent=11 // pred_check
          %p177 = pneg %p86
        $region18: #{tpu_custom_call.1} parent=11 // pred_check_branch
          %179 = sbr.rel (%p177) target = $region20
        $region19: #{tpu_custom_call.1} parent=11 // pred_region
          _
        $region20: #{tpu_custom_call.1} parent=11 // pred_fallthru
          _
        // Predicated region
        $region21: #{tpu_custom_call.1} parent=11 // pred_check
          %p180 = pneg %p107
        $region22: #{tpu_custom_call.1} parent=11 // pred_check_branch
          %182 = sbr.rel (%p180) target = $region24
        $region23: #{tpu_custom_call.1} parent=11 // pred_region
          %s184 = ssub.s32 16, 16
          %185 = vsyncadd [#allocation5], %s184
          %s187 = sshll.u32 %s3, 4
          %s188 = int_to_ptr.vmem [resolvable:$true] %s187
          %190 = dma.vmem_to_smem %s188, 16, [#allocation6], [#allocation5]
        $region24: #{tpu_custom_call.1} parent=11 // pred_fallthru
          _
      $region12: #{tpu_custom_call.1} parent=5 // pred_fallthru
        _
      %p191 = scmp.lt.s32.totalorder %s18, 2
      // Predicated region
      $region25: #{tpu_custom_call.1} parent=5 // pred_check
        %p192 = pneg %p191
      $region26: #{tpu_custom_call.1} parent=5 // pred_check_branch
        %194 = sbr.rel (%p192) target = $region28
      $region27: #{tpu_custom_call.1} parent=5 // pred_region
        // Predicated region
        $region29: #{tpu_custom_call.1} parent=27 // pred_check
          %p195 = pneg %p38
        $region30: #{tpu_custom_call.1} parent=27 // pred_check_branch
          %197 = sbr.rel (%p195) target = $region32
        $region31: #{tpu_custom_call.1} parent=27 // pred_region
          %s198 = sand.u32 %s28, 1
          %s199 = scalar_lea.sflag [#allocation3], %s198
          %s200 = sand.u32 %s28, 1
          %s201 = smul.addr %s200, 8
          %s202 = scalar_lea.vmem [#allocation2], %s201
          %s204 = ssub.s32 128, 128
          %205 = vsyncadd %s199, %s204
          %s206 = smul.addr %s18, 2
          %s207 = smul.addr %s206, 64
          %s208 = scalar_lea.hbm %s0, %s207
          %s210 = sshll.u32 %s202, 4
          %s211 = int_to_ptr.vmem [resolvable:$true] %s210
          %213 = dma.hbm_to_vmem [thread:$0]  %s208, 128, %s211, %s199
        $region32: #{tpu_custom_call.1} parent=27 // pred_fallthru
          _
        // Predicated region
        $region33: #{tpu_custom_call.1} parent=27 // pred_check
          %p214 = pneg %p127
        $region34: #{tpu_custom_call.1} parent=27 // pred_check_branch
          %216 = sbr.rel (%p214) target = $region36
        $region35: #{tpu_custom_call.1} parent=27 // pred_region
          %p217 = scmp.lt.s32.totalorder %s18, 1
          %s218 = scalar_select %p217, %s18, 1
          %s219 = smul.addr %s218, 2
          %s220 = smul.addr %s219, 8
          %s221 = scalar_lea.vmem %s4, %s220
        $region36: #{tpu_custom_call.1} parent=27 // pred_fallthru
          _
      $region28: #{tpu_custom_call.1} parent=5 // pred_fallthru
        _
      %p222 = scmp.le.s32.totalorder 1, %s18
      %p223 = scmp.lt.s32.totalorder %s18, 3
      %p224 = pnand %p222, %p223
      %p225 = pneg %p224
      // Predicated region
      $region37: #{tpu_custom_call.1} parent=5 // pred_check
        _
      $region38: #{tpu_custom_call.1} parent=5 // pred_check_branch
        %227 = sbr.rel (%p224) target = $region40
      $region39: #{tpu_custom_call.1} parent=5 // pred_region
        %s228 = ssub.s32 %s18, 1
        %s229 = sand.u32 %s31, 1
        %s230 = scalar_lea.sflag [#allocation3], %s229
        %s231 = sand.u32 %s31, 1
        %s232 = smul.addr %s231, 8
        %s233 = scalar_lea.vmem [#allocation2], %s232
        // Predicated region
        $region41: #{tpu_custom_call.1} parent=39 // pred_check
          %p234 = pneg %p44
        $region42: #{tpu_custom_call.1} parent=39 // pred_check_branch
          %236 = sbr.rel (%p234) target = $region44
        $region43: #{tpu_custom_call.1} parent=39 // pred_region
          %237 = dma.done %s230, 128
        $region44: #{tpu_custom_call.1} parent=39 // pred_fallthru
          _
        // Predicated region
        $region45: #{tpu_custom_call.1} parent=39 // pred_check
          %p238 = pneg %p107
        $region46: #{tpu_custom_call.1} parent=39 // pred_check_branch
          %240 = sbr.rel (%p238) target = $region48
        $region47: #{tpu_custom_call.1} parent=39 // pred_region
          %241 = dma.done [#allocation5], 16
        $region48: #{tpu_custom_call.1} parent=39 // pred_fallthru
          _
        %242 = sfence
        %s243 = sand.u32 %s31, 1
        %s244 = scalar_lea.sflag [#allocation3], %s243
        %s245 = sand.u32 %s31, 1
        %s246 = smul.addr %s245, 8
        %s247 = scalar_lea.vmem [#allocation2], %s246
        %p248 = pneg %p44
        %p249 = pneg %p41
        %p250 = pneg %p65
        %p251 = pneg %p62
        %p252 = pneg %p86
        %p253 = pneg %p83
        %p254 = pneg %p107
        %p255 = pneg %p104
        %p256 = scmp.lt.s32.totalorder %s23, 1
        %s257 = scalar_select %p256, %s23, 1
        %s258 = smul.addr %s257, 2
        %s259 = smul.addr %s258, 8
        %s260 = scalar_lea.vmem %s4, %s259
        %p261 = pneg %p133
        %p262 = pneg %p130
        %p263 = pneg %p159
        %p264 = pneg %p156
        %s265 = sand.u32 %s146, 1
        %s266 = scalar_lea.sflag [#allocation4], %s265
        %s267 = sand.u32 %s146, 1
        %s268 = smul.addr %s267, 16
        %s269 = scalar_lea.vmem [#allocation7], %s268
        %p270 = scmp.lt.s32.totalorder %s23, 1
        %s271 = scalar_select %p270, %s23, 1
        %s272 = smul.addr %s271, 2
        %s273 = smul.addr %s272, 8
        %s274 = scalar_lea.vmem %s4, %s273
        %v275 = vld [vmem:[%s233] sm:$0xff]
        %v276 = vld [vmem:[%s1] sm:$0xff]
        %v277 = vld [vmem:[%s2] sm:$0xff]
        %279 = vset.pattern.permute.xlu0 0
        %280 = vperm.xlu0 %279, %v277
        %v281 = vpop.permute.xlu0 %280
        %v284 = vcombine.high %v275, %v275
        %vm285 = vcmask 31744
        %v287 = vsel %vm285, %v276, 0
        %vm289 = vcmask 1043456
        %v290 = vsel %vm289, %v275, 0
        %v292 = vsel %vm289, %v284, 0
        %294 = vmatprep.subr.mxu0 %v292
        %295 = vmatpush1.msra.mxu0 %v290
        %296 = vmatprep.subr.mxu0 0.0
        %297 = vmatpush1.msra.mxu0 0.0
        %298 = vmatprep.subr.mxu0 0.0
        %299 = vmatpush1.msra.mxu0 0.0
        %300 = vmatprep.subr.mxu0 0.0
        %301 = vmatpush1.msra.mxu0 0.0
        %302 = vmatprep.subr.mxu0 0.0
        %303 = vmatpush1.msra.mxu0 0.0
        %304 = vmatprep.subr.mxu0 0.0
        %305 = vmatpush1.msra.mxu0 0.0
        %306 = vmatprep.subr.mxu0 0.0
        %307 = vmatpush1.msra.mxu0 0.0
        %308 = vmatprep.subr.mxu0 0.0
        %309 = vmatpush1.msra.mxu0 0.0
        %310 = vmatprep.subr.mxu0 0.0
        %311 = vmatpush1.msra.mxu0 0.0
        %312 = vmatprep.subr.mxu0 0.0
        %313 = vmatpush1.msra.mxu0 0.0
        %314 = vmatprep.subr.mxu0 0.0
        %315 = vmatpush1.msra.mxu0 0.0
        %316 = vmatprep.subr.mxu0 0.0
        %317 = vmatpush1.msra.mxu0 0.0
        %318 = vmatprep.subr.mxu0 0.0
        %319 = vmatpush1.msra.mxu0 0.0
        %320 = vmatprep.subr.mxu0 0.0
        %321 = vmatpush1.msra.mxu0 0.0
        %322 = vmatprep.subr.mxu0 0.0
        %323 = vmatpush1.msra.mxu0 0.0
        %324 = vmatprep.subr.mxu0 0.0
        %325 = vmatpush1.msra.mxu0 0.0
        %326 = vmatprep.subr.mxu0 0.0
        %327 = vmatpush1.msra.mxu0 0.0
        %328 = vmatprep.subr.mxu0 0.0
        %329 = vmatpush1.msra.mxu0 0.0
        %330 = vmatprep.subr.mxu0 0.0
        %331 = vmatpush1.msra.mxu0 0.0
        %332 = vmatprep.subr.mxu0 0.0
        %333 = vmatpush1.msra.mxu0 0.0
        %334 = vmatprep.subr.mxu0 0.0
        %335 = vmatpush1.msra.mxu0 0.0
        %336 = vmatprep.subr.mxu0 0.0
        %337 = vmatpush1.msra.mxu0 0.0
        %338 = vmatprep.subr.mxu0 0.0
        %339 = vmatpush1.msra.mxu0 0.0
        %340 = vmatprep.subr.mxu0 0.0
        %341 = vmatpush1.msra.mxu0 0.0
        %342 = vmatprep.subr.mxu0 0.0
        %343 = vmatpush1.msra.mxu0 0.0
        %344 = vmatprep.subr.mxu0 0.0
        %345 = vmatpush1.msra.mxu0 0.0
        %346 = vmatprep.subr.mxu0 0.0
        %347 = vmatpush1.msra.mxu0 0.0
        %348 = vmatprep.subr.mxu0 0.0
        %349 = vmatpush1.msra.mxu0 0.0
        %350 = vmatprep.subr.mxu0 0.0
        %351 = vmatpush1.msra.mxu0 0.0
        %352 = vmatprep.subr.mxu0 0.0
        %353 = vmatpush1.msra.mxu0 0.0
        %354 = vmatprep.subr.mxu0 0.0
        %355 = vmatpush1.msra.mxu0 0.0
        %356 = vmatprep.subr.mxu0 0.0
        %357 = vmatpush1.msra.mxu0 0.0
        %358 = vmatprep.mubr.f32.mxu0 0.0
        %359 = vmatmul.mubr.f32.gmra.mrb[0].mxu0 %v287
        %v360 = vpop.f32.mrb[0].mxu0
        %v361 = vadd.f32 %v281, %v360
        %v362 = vpop.f32.mrb[0].mxu0
        %v363 = vadd.f32 %v281, %v362
        %364 = vdwg.mxu0
        %v365 = vadd.f32 %v361, %v363
        %366 = vadd.xlane.f32.xlu0 %v365
        %v367 = vpop.xlane.xlu0 %366
        %v368 = vrcp.pop 256.0
        %v369 = vmul.f32 %v367, %v368
        %v370 = vsub.f32 %v361, %v369
        %v371 = vsub.f32 %v363, %v369
        %v372 = vmul.f32 %v370, %v370
        %v373 = vmul.f32 %v371, %v371
        %v374 = vadd.f32 %v372, %v373
        %375 = vadd.xlane.f32.xlu0 %v374
        %v376 = vpop.xlane.xlu0 %375
        %v377 = vmul.f32 %v376, %v368
        %v378 = vadd.f32 %v377, 1e-05
        %v379 = vrsqrt.pop %v378
        %v380 = vmul.f32 %v370, %v379
        %v381 = vmul.f32 %v371, %v379
        %v382 = vld [vmem:[%s2] sm:$0xff]
        %384 = vset.pattern.permute.xlu0 1
        %385 = vperm.xlu0 %384, %v382
        %v386 = vpop.permute.xlu0 %385
        %v388 = vmul.f32 %v380, %v386
        %v389 = vmul.f32 %v381, %v386
        %390 = vset.pattern.permute.xlu0 2
        %391 = vperm.xlu0 %390, %v382
        %v392 = vpop.permute.xlu0 %391
        %v394 = vadd.f32 %v388, %v392
        %v395 = vadd.f32 %v389, %v392
        %v396 = vmax.f32 %v394, 0.0
        %v397 = vmax.f32 %v395, 0.0
        %s398 = sld [smem:[#allocation6]]
        %v399 = vstv %s398
        %v400 = vmul.f32 %v399, %v396
        %v401 = vmul.f32 %v399, %v397
        %s402 = sld [smem:[#allocation6 + $0x1]]
        %v403 = vld [vmem:[%s274] sm:$0xff]
        %v404 = vld [vmem:[%s274 + $0x8] sm:$0xff]
        %v405 = vstv %s402
        %v406 = vmul.f32 %v405, %v403
        %v407 = vmul.f32 %v405, %v404
        %v408 = vadd.f32 %v400, %v406
        %v409 = vadd.f32 %v401, %v407
        %410 = vst [vmem:[%s269] sm:$0xff] %v408
        %411 = vst [vmem:[%s269 + $0x8] sm:$0xff] %v409
        %s412 = sand.u32 %s146, 1
        %s413 = scalar_lea.sflag [#allocation4], %s412
        %s414 = sand.u32 %s146, 1
        %s415 = smul.addr %s414, 16
        %s416 = scalar_lea.vmem [#allocation7], %s415
        // Predicated region
        $region49: #{tpu_custom_call.1} parent=39 // pred_check
          %p417 = pneg %p156
        $region50: #{tpu_custom_call.1} parent=39 // pred_check_branch
          %419 = sbr.rel (%p417) target = $region52
        $region51: #{tpu_custom_call.1} parent=39 // pred_region
          %s421 = ssub.s32 256, 256
          %422 = vsyncadd %s413, %s421
          %s423 = smul.addr %s23, 2
          %s424 = smul.addr %s423, 128
          %s425 = scalar_lea.hbm %s5, %s424
          %s427 = sshll.u32 %s416, 4
          %s428 = int_to_ptr.vmem [resolvable:$true] %s427
          %430 = dma.vmem_to_hbm [thread:$0]  %s428, 256, %s425, %s413
        $region52: #{tpu_custom_call.1} parent=39 // pred_fallthru
          _
      $region40: #{tpu_custom_call.1} parent=5 // pred_fallthru
        _
      %p431 = scmp.le.s32.totalorder 2, %s18
      // Predicated region
      $region53: #{tpu_custom_call.1} parent=5 // pred_check
        %p432 = pneg %p431
      $region54: #{tpu_custom_call.1} parent=5 // pred_check_branch
        %434 = sbr.rel (%p432) target = $region56
      $region55: #{tpu_custom_call.1} parent=5 // pred_region
        %s435 = ssub.s32 %s18, 2
        // Predicated region
        $region57: #{tpu_custom_call.1} parent=55 // pred_check
          %p436 = pneg %p162
        $region58: #{tpu_custom_call.1} parent=55 // pred_check_branch
          %438 = sbr.rel (%p436) target = $region60
        $region59: #{tpu_custom_call.1} parent=55 // pred_region
          %s439 = sand.u32 %s147, 1
          %s440 = scalar_lea.sflag [#allocation4], %s439
          %s441 = sand.u32 %s147, 1
          %s442 = smul.addr %s441, 16
          %s443 = scalar_lea.vmem [#allocation7], %s442
          %444 = dma.done %s440, 256
        $region60: #{tpu_custom_call.1} parent=55 // pred_fallthru
          _
      $region56: #{tpu_custom_call.1} parent=5 // pred_fallthru
        _
    $region6: #{tpu_custom_call.1} parent=1 // loop_footer
      %s22 = sadd.s32 1, %s18
    $region7: #{tpu_custom_call.1} parent=1 // loop_footer_branch
      %17 = sbr.rel target = $region3
    $region8: #{tpu_custom_call.1} parent=1 // loop_exit
      _
    %445 = vsyncpa [#allocation3], 1
    %s446 = scalar_lea.sflag [#allocation3], 1
    %447 = vsyncpa %s446, 1
    %448 = vsyncpa [#allocation4], 1
    %s449 = scalar_lea.sflag [#allocation4], 1
    %450 = vsyncpa %s449, 1
    %451 = vsyncpa [#allocation5], 1
    %s452 = scalar_lea.sflag [#allocation5], 1
    %453 = vsyncpa %s452, 1

</llo_original>
